<compile_context>
chip_gen: v6e
topology: v6e:2x2x1
jax: 0.10.0
libtpu: 0.0.40
codegen_flags: <defaults>
</compile_context>

<pallas_src>
import functools

import jax
import jax.numpy as jnp
from jax import lax
from jax.experimental import pallas as pl
from jax.experimental.pallas import tpu as pltpu


# ----------------------------- small helpers ------------------------------- #

def _round_up(n, m):
    return ((n + m - 1) // m) * m


def _chip_tuning():
    """(row_tile_cap, vmem_limit_bytes) tuned per TPU generation."""
    kind = ""
    try:
        kind = jax.devices()[0].device_kind.lower()
    except Exception:
        pass
    if "v7" in kind or "7x" in kind:
        # v7x: 64 MiB VMEM per TensorCore -> smaller tiles, tighter budget.
        return 256, 48 * 1024 * 1024
    # v5e / v6e: 128 MiB physical VMEM -> bigger tiles, bigger budget.
    return 512, 80 * 1024 * 1024


def _choose_row_tile(n, cap):
    """Row tile: multiple of 16 (bf16 sublane packing), capped per chip.
    N is padded up to a multiple of the tile (never T=N giant-block fallback)."""
    return min(cap, _round_up(max(n, 1), 16))


def _compiler_params(vmem_limit_bytes):
    return pltpu.CompilerParams(
        dimension_semantics=("parallel",),
        vmem_limit_bytes=vmem_limit_bytes)


# ----------------------------- in-kernel math ------------------------------ #

def _leaky_relu(x, alpha):
    return jnp.where(x > 0, x, alpha * x)


def _elu(x):
    return jnp.where(x > 0, x, jnp.exp(x) - 1.0)


# ----------------------------- kernels ------------------------------------- #

def gat_hidden_kernel(h_all_ref, e_src_ref, e_dst_ref, bias_ref, adj_ref,
                      out_ref, *, alpha, nheads, nhid, hh):
    """All hidden attention heads; one row tile of query nodes per grid step.

    h_all: (N, HH)     bf16  projected features (keys / values), VMEM-resident
    e_src: (T, H)      f32   per-head source scores for this row tile
    e_dst: (H, N)      f32   per-head destination scores, whole graph
    bias:  (1, HH)     f32
    adj:   (T, N)      bf16  adjacency rows of this tile (0/1)
    out:   (T, HH_pad) bf16  lane-dense concatenated head outputs
    """
    maskf = adj_ref[...].astype(jnp.float32)          # one cast, reused per head
    for h in range(nheads):                           # static (unrolled) loop
        sl = slice(h * nhid, (h + 1) * nhid)
        e = e_src_ref[:, h:h + 1] + e_dst_ref[h:h + 1, :]            # (T, N)
        e = _leaky_relu(e, alpha)
        # Masked softmax as exp(e - rowmax) * adj (scale-invariant): no per-head
        # select / -9e15 broadcast.  Every node carries at least a self loop
        # (incl. padded rows), so denom > 0 for the approx reciprocal.
        m = jnp.max(e, axis=1, keepdims=True)
        p = jnp.exp(e - m) * maskf
        denom = jnp.sum(p, axis=1, keepdims=True)
        att = p * pl.reciprocal(denom, approx=True)                  # EUP vrcp
        ho = jnp.dot(att.astype(jnp.bfloat16), h_all_ref[:, sl],
                     preferred_element_type=jnp.float32)             # (T, nhid)
        # write each head straight into the output slab (no concatenate)
        out_ref[:, sl] = _elu(ho + bias_ref[:, sl]).astype(out_ref.dtype)
    hh_pad = out_ref.shape[1]
    if hh_pad > hh:   # zero the lane-padding tail once per tile
        out_ref[:, hh:] = jnp.zeros((out_ref.shape[0], hh_pad - hh),
                                    out_ref.dtype)


def gat_out_kernel(h_all_ref, e_src_ref, e_dst_ref, adj_ref, out_ref, *,
                   alpha, nclass):
    """Output attention layer + module-level ELU + log_softmax, row tiled.

    h_all: (N, C_pad)  bf16   projected features of the output layer
    e_src: (T, 1)      f32
    e_dst: (1, N)      f32
    adj:   (T, N)      bf16
    out:   (T, C_pad)  f32    log-probabilities (padded class lanes masked)
    """
    e = _leaky_relu(e_src_ref[...] + e_dst_ref[...], alpha)          # (T, N)
    m = jnp.max(e, axis=1, keepdims=True)
    p = jnp.exp(e - m) * adj_ref[...].astype(jnp.float32)
    denom = jnp.sum(p, axis=1, keepdims=True)
    att = p * pl.reciprocal(denom, approx=True)
    hp = jnp.dot(att.astype(jnp.bfloat16), h_all_ref[...],
                 preferred_element_type=jnp.float32)                 # (T, C_pad)
    hp = _elu(hp)                 # module forward: x = F.elu(out_att(x, adj))
    c_pad = out_ref.shape[1]
    if c_pad > nclass:            # exclude zero-padded class lanes from softmax
        col = lax.broadcasted_iota(jnp.int32, hp.shape, 1)
        hp = jnp.where(col < nclass, hp, jnp.float32(-9e15))
    m2 = jnp.max(hp, axis=1, keepdims=True)
    z = hp - m2
    lse = jnp.log(jnp.sum(jnp.exp(z), axis=1, keepdims=True))
    out_ref[...] = z - lse        # log_softmax(x, dim=1)


# ----------------------------- pallas wrappers ------------------------------ #

def gat_hidden_attention(h_all_b, e_src, e_dst_t, bias_all, adj_b, *,
                         alpha, nheads, nhid, hh_pad, row_tile, vmem_limit):
    n_pad, hh = h_all_b.shape
    grid = (n_pad // row_tile,)
    cost = pl.CostEstimate(                                # post-hoist counts
        flops=int(2 * nheads * n_pad * n_pad * nhid + 10 * nheads * n_pad * n_pad),
        transcendentals=int(nheads * n_pad * n_pad + n_pad * hh),
        bytes_accessed=int(2 * (h_all_b.size + adj_b.size + n_pad * hh_pad)
                           + 4 * (e_src.size + e_dst_t.size + bias_all.size)),
    )
    kernel = functools.partial(gat_hidden_kernel, alpha=alpha,
                               nheads=nheads, nhid=nhid, hh=hh)
    # NOTE(v7x): the constant-index inputs below are good candidates for
    # pipeline_mode=pl.Buffered(1) to halve their VMEM footprint.
    return pl.pallas_call(
        kernel,
        out_shape=jax.ShapeDtypeStruct((n_pad, hh_pad), jnp.bfloat16),
        grid=grid,
        in_specs=[
            pl.BlockSpec((n_pad, hh), lambda r: (0, 0)),          # h_all (bf16)
            pl.BlockSpec((row_tile, nheads), lambda r: (r, 0)),   # e_src rows
            pl.BlockSpec((nheads, n_pad), lambda r: (0, 0)),      # e_dst^T
            pl.BlockSpec((1, hh), lambda r: (0, 0)),              # bias
            pl.BlockSpec((row_tile, n_pad), lambda r: (r, 0)),    # adj rows
        ],
        out_specs=pl.BlockSpec((row_tile, hh_pad), lambda r: (r, 0)),
        compiler_params=_compiler_params(vmem_limit),
        cost_estimate=cost,
    )(h_all_b, e_src, e_dst_t, bias_all, adj_b)


def gat_out_attention(h_all_b, e_src, e_dst_t, adj_b, *, alpha, nclass,
                      row_tile, vmem_limit):
    n_pad, c_pad = h_all_b.shape
    grid = (n_pad // row_tile,)
    cost = pl.CostEstimate(
        flops=int(2 * n_pad * n_pad * c_pad + 10 * n_pad * n_pad),
        transcendentals=int(n_pad * n_pad + 2 * n_pad * c_pad),
        bytes_accessed=int(2 * (h_all_b.size + adj_b.size)
                           + 4 * (e_src.size + e_dst_t.size + n_pad * c_pad)),
    )
    kernel = functools.partial(gat_out_kernel, alpha=alpha, nclass=nclass)
    return pl.pallas_call(
        kernel,
        out_shape=jax.ShapeDtypeStruct((n_pad, c_pad), jnp.float32),
        grid=grid,
        in_specs=[
            pl.BlockSpec((n_pad, c_pad), lambda r: (0, 0)),       # h_out (bf16)
            pl.BlockSpec((row_tile, 1), lambda r: (r, 0)),        # e_src rows
            pl.BlockSpec((1, n_pad), lambda r: (0, 0)),           # e_dst^T
            pl.BlockSpec((row_tile, n_pad), lambda r: (r, 0)),    # adj rows
        ],
        out_specs=pl.BlockSpec((row_tile, c_pad), lambda r: (r, 0)),
        compiler_params=_compiler_params(vmem_limit),
        cost_estimate=cost,
    )(h_all_b, e_src, e_dst_t, adj_b)


# ----------------------------- forward wrapper ------------------------------ #

def _pack_heads(heads):
    """Concat W / bias; block-diagonal a_src / a_dst (one column/row per head)."""
    nheads = len(heads)
    nhid = heads[0]["W"].shape[1]
    hh = nheads * nhid
    w_all = jnp.concatenate([h["W"] for h in heads], axis=1)          # (F, HH)
    bias_all = jnp.concatenate([h["bias"] for h in heads], axis=1)    # (1, HH)
    a_src_bd = jnp.zeros((hh, nheads), jnp.float32)
    a_dst_bd_t = jnp.zeros((nheads, hh), jnp.float32)
    for i, h in enumerate(heads):
        a_src_bd = a_src_bd.at[i * nhid:(i + 1) * nhid, i].set(h["a_src"][0])
        a_dst_bd_t = a_dst_bd_t.at[i, i * nhid:(i + 1) * nhid].set(h["a_dst"][0])
    return w_all, a_src_bd, a_dst_bd_t, bias_all


def gat_forward(params, x, adj, *, alpha=0.2):
    """GATordered_shared_LSTM.forward (inference: F.dropout == identity)."""
    n, _ = x.shape
    heads = params["attentions"]
    nheads = len(heads)
    nhid = heads[0]["W"].shape[1]
    hh = nheads * nhid
    out_p = params["out"]
    nclass = out_p["W"].shape[1]

    row_cap, vmem_limit = _chip_tuning()
    row_tile = _choose_row_tile(n, row_cap)
    n_pad = _round_up(n, row_tile)
    hh_pad = _round_up(hh, 128)       # lane-dense hidden output slab
    c_pad = _round_up(nclass, 128)    # lane-dense final output slab

    # Pad the node dimension; padded rows get a self loop so their softmax is
    # well defined (they are masked out as keys for real rows and sliced off).
    x_p = jnp.pad(x.astype(jnp.float32), ((0, n_pad - n), (0, 0)))
    adj_p = jnp.eye(n_pad, dtype=jnp.bfloat16)
    adj_p = adj_p.at[:n, :n].set(adj.astype(jnp.bfloat16))

    w_all, a_src_bd, a_dst_bd_t, bias_all = _pack_heads(heads)

    # ---- hoisted hidden-layer precompute: ONE projection + score vectors for
    # the whole graph (plain XLA matmuls, run once -- not per grid step / TC).
    h_all = jnp.dot(x_p.astype(jnp.bfloat16), w_all.astype(jnp.bfloat16),
                    preferred_element_type=jnp.float32)            # (n_pad, HH)
    e_src = jnp.dot(h_all, a_src_bd)                               # (n_pad, H)
    e_dst_t = jnp.dot(a_dst_bd_t, h_all.T)                         # (H, n_pad)
    h_all_b = h_all.astype(jnp.bfloat16)

    x_cat = gat_hidden_attention(
        h_all_b, e_src, e_dst_t, bias_all, adj_p,
        alpha=alpha, nheads=nheads, nhid=nhid, hh_pad=hh_pad,
        row_tile=row_tile, vmem_limit=vmem_limit)      # (n_pad, HH_pad) bf16

    # ---- hoisted output-layer precompute (padded weights: zero rows/cols).
    w_o = jnp.pad(out_p["W"], ((0, hh_pad - hh), (0, c_pad - nclass)))
    a_src_o = jnp.pad(out_p["a_src"], ((0, 0), (0, c_pad - nclass)))
    a_dst_o = jnp.pad(out_p["a_dst"], ((0, 0), (0, c_pad - nclass)))
    h_out = jnp.dot(x_cat, w_o.astype(jnp.bfloat16),
                    preferred_element_type=jnp.float32)            # (n_pad, C_pad)
    e_src_o = jnp.dot(h_out, a_src_o.T)                            # (n_pad, 1)
    e_dst_o_t = jnp.dot(a_dst_o, h_out.T)                          # (1, n_pad)
    h_out_b = h_out.astype(jnp.bfloat16)

    logp = gat_out_attention(
        h_out_b, e_src_o, e_dst_o_t, adj_p,
        alpha=alpha, nclass=nclass, row_tile=row_tile,
        vmem_limit=vmem_limit)                          # (n_pad, C_pad) f32
    return logp[:n, :nclass]


# --------------------------- parameter init -------------------------------- #

def _glorot(key, shape):
    fan_in, fan_out = shape[0], shape[-1]
    lim = (6.0 / (fan_in + fan_out)) ** 0.5
    return jax.random.uniform(key, shape, jnp.float32, -lim, lim)


def init_params(key, nfeat, nhid, nclass, nheads):
    keys = jax.random.split(key, nheads + 1)
    attentions = []
    for i in range(nheads):
        k1, k2, k3 = jax.random.split(keys[i], 3)
        attentions.append({
            "W": _glorot(k1, (nfeat, nhid)),
            "a_src": _glorot(k2, (1, nhid)),
            "a_dst": _glorot(k3, (1, nhid)),
            "bias": jnp.zeros((1, nhid), jnp.float32),
        })
    ko1, ko2, ko3 = jax.random.split(keys[-1], 3)
    out = {
        "W": _glorot(ko1, (nhid * nheads, nclass)),
        "a_src": _glorot(ko2, (1, nclass)),
        "a_dst": _glorot(ko3, (1, nclass)),
    }
    return {"attentions": attentions, "out": out}


# ------------------------- pure-JAX references ------------------------------ #

def reference_forward(params, x, adj, *, alpha=0.2, low_precision=False):
    """f32 reference (low_precision=False) or a precision-matched reference
    (bf16 matmul inputs, f32 accumulation, bf16 inter-layer slab)."""
    mm_dt = jnp.bfloat16 if low_precision else jnp.float32

    def mm(a, b):
        return jnp.dot(a.astype(mm_dt), b.astype(mm_dt),
                       preferred_element_type=jnp.float32)

    adjf = adj.astype(jnp.float32)
    outs = []
    for p in params["attentions"]:
        h = mm(x, p["W"])
        e = _leaky_relu(jnp.sum(h * p["a_src"], 1, keepdims=True)
                        + jnp.sum(h * p["a_dst"], 1, keepdims=True).T, alpha)
        e = jnp.where(adjf > 0, e, -9e15)
        att = jax.nn.softmax(e, axis=1)
        outs.append(_elu(mm(att, h) + p["bias"]))
    xc = jnp.concatenate(outs, axis=1)
    if low_precision:
        xc = xc.astype(jnp.bfloat16).astype(jnp.float32)
    po = params["out"]
    h = mm(xc, po["W"])
    e = _leaky_relu(jnp.sum(h * po["a_src"], 1, keepdims=True)
                    + jnp.sum(h * po["a_dst"], 1, keepdims=True).T, alpha)
    e = jnp.where(adjf > 0, e, -9e15)
    att = jax.nn.softmax(e, axis=1)
    return jax.nn.log_softmax(_elu(mm(att, h)), axis=1)


# ------------------------------- main --------------------------------------- #

if __name__ == "__main__":
    # Small synthetic graph: N=16 nodes, nfeat=32, nhid=8, nheads=4, nclass=4
    N, nfeat, nhid, nclass, nheads = 16, 32, 8, 4, 4
    outd_2 = nclass            # unused by the dense approximation
    alpha, dropout = 0.2, 0.6  # dropout is identity at inference

    key = jax.random.PRNGKey(0)
    k_x, k_adj, k_params = jax.random.split(key, 3)

    x = jax.random.normal(k_x, (N, nfeat), jnp.float32)

    # random symmetric adjacency with self loops
    a_rnd = (jax.random.uniform(k_adj, (N, N)) < 0.3).astype(jnp.float32)
    adj = jnp.clip(a_rnd + a_rnd.T + jnp.eye(N, dtype=jnp.float32), 0.0, 1.0)

    params = init_params(k_params, nfeat, nhid, nclass, nheads)

    fwd = jax.jit(functools.partial(gat_forward, alpha=alpha))
    out = jax.block_until_ready(fwd(params, x, adj))

    assert out.shape == (N, nclass)
    assert bool(jnp.all(jnp.isfinite(out)))
    # rows of log_softmax should exp-sum to 1
    assert jnp.allclose(jnp.sum(jnp.exp(out), axis=1), 1.0, atol=1e-3)

    # Tight check vs a precision-matched reference (bf16 matmuls, bf16
    # inter-layer slab): residual delta = approx reciprocal + reduction order.
    ref_lp = reference_forward(params, x, adj, alpha=alpha, low_precision=True)
    assert float(jnp.max(jnp.abs(out - ref_lp))) < 3e-2
    # Loose sanity check vs the pure-f32 reference (documents the bf16 budget).
    ref_f32 = reference_forward(params, x, adj, alpha=alpha, low_precision=False)
    assert float(jnp.max(jnp.abs(out - ref_f32))) < 1.5e-1

    print("KERNEL_OK")
</pallas_src>

<mosaic_0001>
module attributes {stable_mosaic.version = 11 : i64} {
  func.func @gat_hidden_kernel(%arg0: i32, %arg1: memref<16x32xbf16, #tpu.memory_space<vmem>>, %arg2: memref<16x4xf32, #tpu.memory_space<vmem>>, %arg3: memref<4x16xf32, #tpu.memory_space<vmem>>, %arg4: memref<1x32xf32, #tpu.memory_space<vmem>>, %arg5: memref<16x16xbf16, #tpu.memory_space<vmem>>, %arg6: memref<16x128xbf16, #tpu.memory_space<vmem>>) attributes {dimension_semantics = [#tpu.dimension_semantics<parallel>], iteration_bounds = array<i64: 1>, scalar_prefetch = 0 : i64, scratch_operands = 0 : i64, tpu.core_type = #tpu.core_type<tc>, window_params = [{pipeline_mode = #tpu.pipeline_mode<synchronous>, transform_indices = @transform_0, window_bounds = array<i64: 16, 32>}, {transform_indices = @transform_1, window_bounds = array<i64: 16, 4>}, {pipeline_mode = #tpu.pipeline_mode<synchronous>, transform_indices = @transform_2, window_bounds = array<i64: 4, 16>}, {pipeline_mode = #tpu.pipeline_mode<synchronous>, transform_indices = @transform_3, window_bounds = array<i64: 1, 32>}, {transform_indices = @transform_4, window_bounds = array<i64: 16, 16>}, {transform_indices = @transform_5, window_bounds = array<i64: 16, 128>}]} {
    %c0 = arith.constant 0 : index
    %c0_0 = arith.constant 0 : index
    %0 = vector.load %arg5[%c0, %c0_0] : memref<16x16xbf16, #tpu.memory_space<vmem>>, vector<16x16xbf16>
    %1 = arith.extf %0 : vector<16x16xbf16> to vector<16x16xf32>
    %c0_1 = arith.constant 0 : index
    %c0_2 = arith.constant 0 : index
    %2 = vector.load %arg2[%c0_1, %c0_2] : memref<16x4xf32, #tpu.memory_space<vmem>>, vector<16x1xf32>
    %c0_3 = arith.constant 0 : index
    %c0_4 = arith.constant 0 : index
    %3 = vector.load %arg3[%c0_3, %c0_4] : memref<4x16xf32, #tpu.memory_space<vmem>>, vector<1x16xf32>
    %4 = vector.broadcast %2 : vector<16x1xf32> to vector<16x16xf32>
    %5 = vector.broadcast %3 : vector<1x16xf32> to vector<16x16xf32>
    %6 = arith.addf %4, %5 : vector<16x16xf32>
    %cst = arith.constant 0.000000e+00 : f32
    %7 = vector.broadcast %cst : f32 to vector<16x16xf32>
    %8 = arith.cmpf ogt, %6, %7 : vector<16x16xf32>
    %cst_5 = arith.constant 2.000000e-01 : f32
    %9 = vector.broadcast %cst_5 : f32 to vector<16x16xf32>
    %10 = arith.mulf %9, %6 : vector<16x16xf32>
    %11 = arith.select %8, %6, %10 : vector<16x16xi1>, vector<16x16xf32>
    %cst_6 = arith.constant dense<0xFF800000> : vector<16xf32>
    %12 = vector.multi_reduction <maximumf>, %11, %cst_6 [1] : vector<16x16xf32> to vector<16xf32>
    %13 = vector.shape_cast %12 : vector<16xf32> to vector<16x1xf32>
    %14 = vector.broadcast %13 : vector<16x1xf32> to vector<16x16xf32>
    %15 = arith.subf %11, %14 : vector<16x16xf32>
    %16 = math.exp %15 : vector<16x16xf32>
    %17 = arith.mulf %16, %1 : vector<16x16xf32>
    %cst_7 = arith.constant dense<0.000000e+00> : vector<16xf32>
    %18 = vector.multi_reduction <add>, %17, %cst_7 [1] : vector<16x16xf32> to vector<16xf32>
    %19 = vector.shape_cast %18 : vector<16xf32> to vector<16x1xf32>
    %20 = tpu.reciprocal %19 {approx = true} : vector<16x1xf32> -> vector<16x1xf32>
    %21 = vector.broadcast %20 : vector<16x1xf32> to vector<16x16xf32>
    %22 = arith.mulf %17, %21 : vector<16x16xf32>
    %23 = arith.truncf %22 : vector<16x16xf32> to vector<16x16xbf16>
    %c0_8 = arith.constant 0 : index
    %c0_9 = arith.constant 0 : index
    %24 = vector.load %arg1[%c0_8, %c0_9] : memref<16x32xbf16, #tpu.memory_space<vmem>>, vector<16x8xbf16>
    %cst_10 = arith.constant dense<0.000000e+00> : vector<16x8xf32>
    %25 = tpu.matmul %23, %24, %cst_10 {dimension_numbers = #tpu.dot_dimension_numbers<[1], [0], [0], [1], [0, 0, 1, 1], [], []>} : vector<16x16xbf16>, vector<16x8xbf16>, vector<16x8xf32> -> vector<16x8xf32>
    %c0_11 = arith.constant 0 : index
    %c0_12 = arith.constant 0 : index
    %26 = vector.load %arg4[%c0_11, %c0_12] : memref<1x32xf32, #tpu.memory_space<vmem>>, vector<1x8xf32>
    %27 = vector.broadcast %26 : vector<1x8xf32> to vector<16x8xf32>
    %28 = arith.addf %25, %27 : vector<16x8xf32>
    %cst_13 = arith.constant 0.000000e+00 : f32
    %29 = vector.broadcast %cst_13 : f32 to vector<16x8xf32>
    %30 = arith.cmpf ogt, %28, %29 : vector<16x8xf32>
    %31 = math.exp %28 : vector<16x8xf32>
    %cst_14 = arith.constant 1.000000e+00 : f32
    %32 = vector.broadcast %cst_14 : f32 to vector<16x8xf32>
    %33 = arith.subf %31, %32 : vector<16x8xf32>
    %34 = arith.select %30, %28, %33 : vector<16x8xi1>, vector<16x8xf32>
    %35 = arith.truncf %34 : vector<16x8xf32> to vector<16x8xbf16>
    %c0_15 = arith.constant 0 : index
    %c0_16 = arith.constant 0 : index
    %36 = vector.load %arg6[%c0_15, %c0_16] : memref<16x128xbf16, #tpu.memory_space<vmem>>, vector<16x8xbf16>
    tpu.vector_store %arg6[%c0_15, %c0_16], %35 {strides = array<i32>} : memref<16x128xbf16, #tpu.memory_space<vmem>>, vector<16x8xbf16>,
    %c0_17 = arith.constant 0 : index
    %c1 = arith.constant 1 : index
    %37 = vector.load %arg2[%c0_17, %c1] : memref<16x4xf32, #tpu.memory_space<vmem>>, vector<16x1xf32>
    %c1_18 = arith.constant 1 : index
    %c0_19 = arith.constant 0 : index
    %38 = vector.load %arg3[%c1_18, %c0_19] : memref<4x16xf32, #tpu.memory_space<vmem>>, vector<1x16xf32>
    %39 = vector.broadcast %37 : vector<16x1xf32> to vector<16x16xf32>
    %40 = vector.broadcast %38 : vector<1x16xf32> to vector<16x16xf32>
    %41 = arith.addf %39, %40 : vector<16x16xf32>
    %cst_20 = arith.constant 0.000000e+00 : f32
    %42 = vector.broadcast %cst_20 : f32 to vector<16x16xf32>
    %43 = arith.cmpf ogt, %41, %42 : vector<16x16xf32>
    %cst_21 = arith.constant 2.000000e-01 : f32
    %44 = vector.broadcast %cst_21 : f32 to vector<16x16xf32>
    %45 = arith.mulf %44, %41 : vector<16x16xf32>
    %46 = arith.select %43, %41, %45 : vector<16x16xi1>, vector<16x16xf32>
    %cst_22 = arith.constant dense<0xFF800000> : vector<16xf32>
    %47 = vector.multi_reduction <maximumf>, %46, %cst_22 [1] : vector<16x16xf32> to vector<16xf32>
    %48 = vector.shape_cast %47 : vector<16xf32> to vector<16x1xf32>
    %49 = vector.broadcast %48 : vector<16x1xf32> to vector<16x16xf32>
    %50 = arith.subf %46, %49 : vector<16x16xf32>
    %51 = math.exp %50 : vector<16x16xf32>
    %52 = arith.mulf %51, %1 : vector<16x16xf32>
    %cst_23 = arith.constant dense<0.000000e+00> : vector<16xf32>
    %53 = vector.multi_reduction <add>, %52, %cst_23 [1] : vector<16x16xf32> to vector<16xf32>
    %54 = vector.shape_cast %53 : vector<16xf32> to vector<16x1xf32>
    %55 = tpu.reciprocal %54 {approx = true} : vector<16x1xf32> -> vector<16x1xf32>
    %56 = vector.broadcast %55 : vector<16x1xf32> to vector<16x16xf32>
    %57 = arith.mulf %52, %56 : vector<16x16xf32>
    %58 = arith.truncf %57 : vector<16x16xf32> to vector<16x16xbf16>
    %c0_24 = arith.constant 0 : index
    %c8 = arith.constant 8 : index
    %59 = vector.load %arg1[%c0_24, %c8] : memref<16x32xbf16, #tpu.memory_space<vmem>>, vector<16x8xbf16>
    %cst_25 = arith.constant dense<0.000000e+00> : vector<16x8xf32>
    %60 = tpu.matmul %58, %59, %cst_25 {dimension_numbers = #tpu.dot_dimension_numbers<[1], [0], [0], [1], [0, 0, 1, 1], [], []>} : vector<16x16xbf16>, vector<16x8xbf16>, vector<16x8xf32> -> vector<16x8xf32>
    %c0_26 = arith.constant 0 : index
    %c8_27 = arith.constant 8 : index
    %61 = vector.load %arg4[%c0_26, %c8_27] : memref<1x32xf32, #tpu.memory_space<vmem>>, vector<1x8xf32>
    %62 = vector.broadcast %61 : vector<1x8xf32> to vector<16x8xf32>
    %63 = arith.addf %60, %62 : vector<16x8xf32>
    %cst_28 = arith.constant 0.000000e+00 : f32
    %64 = vector.broadcast %cst_28 : f32 to vector<16x8xf32>
    %65 = arith.cmpf ogt, %63, %64 : vector<16x8xf32>
    %66 = math.exp %63 : vector<16x8xf32>
    %cst_29 = arith.constant 1.000000e+00 : f32
    %67 = vector.broadcast %cst_29 : f32 to vector<16x8xf32>
    %68 = arith.subf %66, %67 : vector<16x8xf32>
    %69 = arith.select %65, %63, %68 : vector<16x8xi1>, vector<16x8xf32>
    %70 = arith.truncf %69 : vector<16x8xf32> to vector<16x8xbf16>
    %c0_30 = arith.constant 0 : index
    %c8_31 = arith.constant 8 : index
    %71 = vector.load %arg6[%c0_30, %c8_31] : memref<16x128xbf16, #tpu.memory_space<vmem>>, vector<16x8xbf16>
    tpu.vector_store %arg6[%c0_30, %c8_31], %70 {strides = array<i32>} : memref<16x128xbf16, #tpu.memory_space<vmem>>, vector<16x8xbf16>,
    %c0_32 = arith.constant 0 : index
    %c2 = arith.constant 2 : index
    %72 = vector.load %arg2[%c0_32, %c2] : memref<16x4xf32, #tpu.memory_space<vmem>>, vector<16x1xf32>
    %c2_33 = arith.constant 2 : index
    %c0_34 = arith.constant 0 : index
    %73 = vector.load %arg3[%c2_33, %c0_34] : memref<4x16xf32, #tpu.memory_space<vmem>>, vector<1x16xf32>
    %74 = vector.broadcast %72 : vector<16x1xf32> to vector<16x16xf32>
    %75 = vector.broadcast %73 : vector<1x16xf32> to vector<16x16xf32>
    %76 = arith.addf %74, %75 : vector<16x16xf32>
    %cst_35 = arith.constant 0.000000e+00 : f32
    %77 = vector.broadcast %cst_35 : f32 to vector<16x16xf32>
    %78 = arith.cmpf ogt, %76, %77 : vector<16x16xf32>
    %cst_36 = arith.constant 2.000000e-01 : f32
    %79 = vector.broadcast %cst_36 : f32 to vector<16x16xf32>
    %80 = arith.mulf %79, %76 : vector<16x16xf32>
    %81 = arith.select %78, %76, %80 : vector<16x16xi1>, vector<16x16xf32>
    %cst_37 = arith.constant dense<0xFF800000> : vector<16xf32>
    %82 = vector.multi_reduction <maximumf>, %81, %cst_37 [1] : vector<16x16xf32> to vector<16xf32>
    %83 = vector.shape_cast %82 : vector<16xf32> to vector<16x1xf32>
    %84 = vector.broadcast %83 : vector<16x1xf32> to vector<16x16xf32>
    %85 = arith.subf %81, %84 : vector<16x16xf32>
    %86 = math.exp %85 : vector<16x16xf32>
    %87 = arith.mulf %86, %1 : vector<16x16xf32>
    %cst_38 = arith.constant dense<0.000000e+00> : vector<16xf32>
    %88 = vector.multi_reduction <add>, %87, %cst_38 [1] : vector<16x16xf32> to vector<16xf32>
    %89 = vector.shape_cast %88 : vector<16xf32> to vector<16x1xf32>
    %90 = tpu.reciprocal %89 {approx = true} : vector<16x1xf32> -> vector<16x1xf32>
    %91 = vector.broadcast %90 : vector<16x1xf32> to vector<16x16xf32>
    %92 = arith.mulf %87, %91 : vector<16x16xf32>
    %93 = arith.truncf %92 : vector<16x16xf32> to vector<16x16xbf16>
    %c0_39 = arith.constant 0 : index
    %c16 = arith.constant 16 : index
    %94 = vector.load %arg1[%c0_39, %c16] : memref<16x32xbf16, #tpu.memory_space<vmem>>, vector<16x8xbf16>
    %cst_40 = arith.constant dense<0.000000e+00> : vector<16x8xf32>
    %95 = tpu.matmul %93, %94, %cst_40 {dimension_numbers = #tpu.dot_dimension_numbers<[1], [0], [0], [1], [0, 0, 1, 1], [], []>} : vector<16x16xbf16>, vector<16x8xbf16>, vector<16x8xf32> -> vector<16x8xf32>
    %c0_41 = arith.constant 0 : index
    %c16_42 = arith.constant 16 : index
    %96 = vector.load %arg4[%c0_41, %c16_42] : memref<1x32xf32, #tpu.memory_space<vmem>>, vector<1x8xf32>
    %97 = vector.broadcast %96 : vector<1x8xf32> to vector<16x8xf32>
    %98 = arith.addf %95, %97 : vector<16x8xf32>
    %cst_43 = arith.constant 0.000000e+00 : f32
    %99 = vector.broadcast %cst_43 : f32 to vector<16x8xf32>
    %100 = arith.cmpf ogt, %98, %99 : vector<16x8xf32>
    %101 = math.exp %98 : vector<16x8xf32>
    %cst_44 = arith.constant 1.000000e+00 : f32
    %102 = vector.broadcast %cst_44 : f32 to vector<16x8xf32>
    %103 = arith.subf %101, %102 : vector<16x8xf32>
    %104 = arith.select %100, %98, %103 : vector<16x8xi1>, vector<16x8xf32>
    %105 = arith.truncf %104 : vector<16x8xf32> to vector<16x8xbf16>
    %c0_45 = arith.constant 0 : index
    %c16_46 = arith.constant 16 : index
    %106 = vector.load %arg6[%c0_45, %c16_46] : memref<16x128xbf16, #tpu.memory_space<vmem>>, vector<16x8xbf16>
    tpu.vector_store %arg6[%c0_45, %c16_46], %105 {strides = array<i32>} : memref<16x128xbf16, #tpu.memory_space<vmem>>, vector<16x8xbf16>,
    %c0_47 = arith.constant 0 : index
    %c3 = arith.constant 3 : index
    %107 = vector.load %arg2[%c0_47, %c3] : memref<16x4xf32, #tpu.memory_space<vmem>>, vector<16x1xf32>
    %c3_48 = arith.constant 3 : index
    %c0_49 = arith.constant 0 : index
    %108 = vector.load %arg3[%c3_48, %c0_49] : memref<4x16xf32, #tpu.memory_space<vmem>>, vector<1x16xf32>
    %109 = vector.broadcast %107 : vector<16x1xf32> to vector<16x16xf32>
    %110 = vector.broadcast %108 : vector<1x16xf32> to vector<16x16xf32>
    %111 = arith.addf %109, %110 : vector<16x16xf32>
    %cst_50 = arith.constant 0.000000e+00 : f32
    %112 = vector.broadcast %cst_50 : f32 to vector<16x16xf32>
    %113 = arith.cmpf ogt, %111, %112 : vector<16x16xf32>
    %cst_51 = arith.constant 2.000000e-01 : f32
    %114 = vector.broadcast %cst_51 : f32 to vector<16x16xf32>
    %115 = arith.mulf %114, %111 : vector<16x16xf32>
    %116 = arith.select %113, %111, %115 : vector<16x16xi1>, vector<16x16xf32>
    %cst_52 = arith.constant dense<0xFF800000> : vector<16xf32>
    %117 = vector.multi_reduction <maximumf>, %116, %cst_52 [1] : vector<16x16xf32> to vector<16xf32>
    %118 = vector.shape_cast %117 : vector<16xf32> to vector<16x1xf32>
    %119 = vector.broadcast %118 : vector<16x1xf32> to vector<16x16xf32>
    %120 = arith.subf %116, %119 : vector<16x16xf32>
    %121 = math.exp %120 : vector<16x16xf32>
    %122 = arith.mulf %121, %1 : vector<16x16xf32>
    %cst_53 = arith.constant dense<0.000000e+00> : vector<16xf32>
    %123 = vector.multi_reduction <add>, %122, %cst_53 [1] : vector<16x16xf32> to vector<16xf32>
    %124 = vector.shape_cast %123 : vector<16xf32> to vector<16x1xf32>
    %125 = tpu.reciprocal %124 {approx = true} : vector<16x1xf32> -> vector<16x1xf32>
    %126 = vector.broadcast %125 : vector<16x1xf32> to vector<16x16xf32>
    %127 = arith.mulf %122, %126 : vector<16x16xf32>
    %128 = arith.truncf %127 : vector<16x16xf32> to vector<16x16xbf16>
    %c0_54 = arith.constant 0 : index
    %c24 = arith.constant 24 : index
    %129 = vector.load %arg1[%c0_54, %c24] : memref<16x32xbf16, #tpu.memory_space<vmem>>, vector<16x8xbf16>
    %cst_55 = arith.constant dense<0.000000e+00> : vector<16x8xf32>
    %130 = tpu.matmul %128, %129, %cst_55 {dimension_numbers = #tpu.dot_dimension_numbers<[1], [0], [0], [1], [0, 0, 1, 1], [], []>} : vector<16x16xbf16>, vector<16x8xbf16>, vector<16x8xf32> -> vector<16x8xf32>
    %c0_56 = arith.constant 0 : index
    %c24_57 = arith.constant 24 : index
    %131 = vector.load %arg4[%c0_56, %c24_57] : memref<1x32xf32, #tpu.memory_space<vmem>>, vector<1x8xf32>
    %132 = vector.broadcast %131 : vector<1x8xf32> to vector<16x8xf32>
    %133 = arith.addf %130, %132 : vector<16x8xf32>
    %cst_58 = arith.constant 0.000000e+00 : f32
    %134 = vector.broadcast %cst_58 : f32 to vector<16x8xf32>
    %135 = arith.cmpf ogt, %133, %134 : vector<16x8xf32>
    %136 = math.exp %133 : vector<16x8xf32>
    %cst_59 = arith.constant 1.000000e+00 : f32
    %137 = vector.broadcast %cst_59 : f32 to vector<16x8xf32>
    %138 = arith.subf %136, %137 : vector<16x8xf32>
    %139 = arith.select %135, %133, %138 : vector<16x8xi1>, vector<16x8xf32>
    %140 = arith.truncf %139 : vector<16x8xf32> to vector<16x8xbf16>
    %c0_60 = arith.constant 0 : index
    %c24_61 = arith.constant 24 : index
    %141 = vector.load %arg6[%c0_60, %c24_61] : memref<16x128xbf16, #tpu.memory_space<vmem>>, vector<16x8xbf16>
    tpu.vector_store %arg6[%c0_60, %c24_61], %140 {strides = array<i32>} : memref<16x128xbf16, #tpu.memory_space<vmem>>, vector<16x8xbf16>,
    %cst_62 = arith.constant 0.000000e+00 : bf16
    %142 = vector.broadcast %cst_62 : bf16 to vector<16x96xbf16>
    %c0_63 = arith.constant 0 : index
    %c32 = arith.constant 32 : index
    %143 = vector.load %arg6[%c0_63, %c32] : memref<16x128xbf16, #tpu.memory_space<vmem>>, vector<16x96xbf16>
    tpu.vector_store %arg6[%c0_63, %c32], %142 {strides = array<i32>} : memref<16x128xbf16, #tpu.memory_space<vmem>>, vector<16x96xbf16>,
    return
  }
  func.func @transform_0(%arg0: i32) -> (i32, i32) {
    %c0_i32 = arith.constant 0 : i32
    %c0_i32_0 = arith.constant 0 : i32
    %c0_i32_1 = arith.constant 0 : i32
    return %c0_i32, %c0_i32_0 : i32, i32
  }
  func.func @transform_1(%arg0: i32) -> (i32, i32) {
    %c0_i32 = arith.constant 0 : i32
    %c0_i32_0 = arith.constant 0 : i32
    return %arg0, %c0_i32 : i32, i32
  }
  func.func @transform_2(%arg0: i32) -> (i32, i32) {
    %c0_i32 = arith.constant 0 : i32
    %c0_i32_0 = arith.constant 0 : i32
    %c0_i32_1 = arith.constant 0 : i32
    return %c0_i32, %c0_i32_0 : i32, i32
  }
  func.func @transform_3(%arg0: i32) -> (i32, i32) {
    %c0_i32 = arith.constant 0 : i32
    %c0_i32_0 = arith.constant 0 : i32
    %c0_i32_1 = arith.constant 0 : i32
    return %c0_i32, %c0_i32_0 : i32, i32
  }
  func.func @transform_4(%arg0: i32) -> (i32, i32) {
    %c0_i32 = arith.constant 0 : i32
    %c0_i32_0 = arith.constant 0 : i32
    return %arg0, %c0_i32 : i32, i32
  }
  func.func @transform_5(%arg0: i32) -> (i32, i32) {
    %c0_i32 = arith.constant 0 : i32
    %c0_i32_0 = arith.constant 0 : i32
    return %arg0, %c0_i32 : i32, i32
  }
}

module attributes {stable_mosaic.version = 11 : i64} {
  func.func @gat_out_kernel(%arg0: i32, %arg1: memref<16x128xbf16, #tpu.memory_space<vmem>>, %arg2: memref<16x1xf32, #tpu.memory_space<vmem>>, %arg3: memref<1x16xf32, #tpu.memory_space<vmem>>, %arg4: memref<16x16xbf16, #tpu.memory_space<vmem>>, %arg5: memref<16x128xf32, #tpu.memory_space<vmem>>) attributes {dimension_semantics = [#tpu.dimension_semantics<parallel>], iteration_bounds = array<i64: 1>, scalar_prefetch = 0 : i64, scratch_operands = 0 : i64, tpu.core_type = #tpu.core_type<tc>, window_params = [{pipeline_mode = #tpu.pipeline_mode<synchronous>, transform_indices = @transform_0, window_bounds = array<i64: 16, 128>}, {transform_indices = @transform_1, window_bounds = array<i64: 16, 1>}, {pipeline_mode = #tpu.pipeline_mode<synchronous>, transform_indices = @transform_2, window_bounds = array<i64: 1, 16>}, {transform_indices = @transform_3, window_bounds = array<i64: 16, 16>}, {transform_indices = @transform_4, window_bounds = array<i64: 16, 128>}]} {
    %c0 = arith.constant 0 : index
    %c0_0 = arith.constant 0 : index
    %0 = vector.load %arg2[%c0, %c0_0] : memref<16x1xf32, #tpu.memory_space<vmem>>, vector<16x1xf32>
    %c0_1 = arith.constant 0 : index
    %c0_2 = arith.constant 0 : index
    %1 = vector.load %arg3[%c0_1, %c0_2] : memref<1x16xf32, #tpu.memory_space<vmem>>, vector<1x16xf32>
    %2 = vector.broadcast %0 : vector<16x1xf32> to vector<16x16xf32>
    %3 = vector.broadcast %1 : vector<1x16xf32> to vector<16x16xf32>
    %4 = arith.addf %2, %3 : vector<16x16xf32>
    %cst = arith.constant 0.000000e+00 : f32
    %5 = vector.broadcast %cst : f32 to vector<16x16xf32>
    %6 = arith.cmpf ogt, %4, %5 : vector<16x16xf32>
    %cst_3 = arith.constant 2.000000e-01 : f32
    %7 = vector.broadcast %cst_3 : f32 to vector<16x16xf32>
    %8 = arith.mulf %7, %4 : vector<16x16xf32>
    %9 = arith.select %6, %4, %8 : vector<16x16xi1>, vector<16x16xf32>
    %cst_4 = arith.constant dense<0xFF800000> : vector<16xf32>
    %10 = vector.multi_reduction <maximumf>, %9, %cst_4 [1] : vector<16x16xf32> to vector<16xf32>
    %11 = vector.shape_cast %10 : vector<16xf32> to vector<16x1xf32>
    %12 = vector.broadcast %11 : vector<16x1xf32> to vector<16x16xf32>
    %13 = arith.subf %9, %12 : vector<16x16xf32>
    %14 = math.exp %13 : vector<16x16xf32>
    %c0_5 = arith.constant 0 : index
    %c0_6 = arith.constant 0 : index
    %15 = vector.load %arg4[%c0_5, %c0_6] : memref<16x16xbf16, #tpu.memory_space<vmem>>, vector<16x16xbf16>
    %16 = arith.extf %15 : vector<16x16xbf16> to vector<16x16xf32>
    %17 = arith.mulf %14, %16 : vector<16x16xf32>
    %cst_7 = arith.constant dense<0.000000e+00> : vector<16xf32>
    %18 = vector.multi_reduction <add>, %17, %cst_7 [1] : vector<16x16xf32> to vector<16xf32>
    %19 = vector.shape_cast %18 : vector<16xf32> to vector<16x1xf32>
    %20 = tpu.reciprocal %19 {approx = true} : vector<16x1xf32> -> vector<16x1xf32>
    %21 = vector.broadcast %20 : vector<16x1xf32> to vector<16x16xf32>
    %22 = arith.mulf %17, %21 : vector<16x16xf32>
    %23 = arith.truncf %22 : vector<16x16xf32> to vector<16x16xbf16>
    %c0_8 = arith.constant 0 : index
    %c0_9 = arith.constant 0 : index
    %24 = vector.load %arg1[%c0_8, %c0_9] : memref<16x128xbf16, #tpu.memory_space<vmem>>, vector<16x128xbf16>
    %cst_10 = arith.constant dense<0.000000e+00> : vector<16x128xf32>
    %25 = tpu.matmul %23, %24, %cst_10 {dimension_numbers = #tpu.dot_dimension_numbers<[1], [0], [0], [1], [0, 0, 1, 1], [], []>} : vector<16x16xbf16>, vector<16x128xbf16>, vector<16x128xf32> -> vector<16x128xf32>
    %cst_11 = arith.constant 0.000000e+00 : f32
    %26 = vector.broadcast %cst_11 : f32 to vector<16x128xf32>
    %27 = arith.cmpf ogt, %25, %26 : vector<16x128xf32>
    %28 = math.exp %25 : vector<16x128xf32>
    %cst_12 = arith.constant 1.000000e+00 : f32
    %29 = vector.broadcast %cst_12 : f32 to vector<16x128xf32>
    %30 = arith.subf %28, %29 : vector<16x128xf32>
    %31 = arith.select %27, %25, %30 : vector<16x128xi1>, vector<16x128xf32>
    %32 = tpu.iota {dimensions = array<i32: 1>} : vector<16x128xi32>
    %c4_i32 = arith.constant 4 : i32
    %33 = vector.broadcast %c4_i32 : i32 to vector<16x128xi32>
    %34 = arith.cmpi slt, %32, %33 : vector<16x128xi32>
    %cst_13 = arith.constant -9.000000e+15 : f32
    %35 = vector.broadcast %cst_13 : f32 to vector<16x128xf32>
    %36 = arith.select %34, %31, %35 : vector<16x128xi1>, vector<16x128xf32>
    %cst_14 = arith.constant dense<0xFF800000> : vector<16xf32>
    %37 = vector.multi_reduction <maximumf>, %36, %cst_14 [1] : vector<16x128xf32> to vector<16xf32>
    %38 = vector.shape_cast %37 : vector<16xf32> to vector<16x1xf32>
    %39 = vector.broadcast %38 : vector<16x1xf32> to vector<16x128xf32>
    %40 = arith.subf %36, %39 : vector<16x128xf32>
    %41 = math.exp %40 : vector<16x128xf32>
    %cst_15 = arith.constant dense<0.000000e+00> : vector<16xf32>
    %42 = vector.multi_reduction <add>, %41, %cst_15 [1] : vector<16x128xf32> to vector<16xf32>
    %43 = vector.shape_cast %42 : vector<16xf32> to vector<16x1xf32>
    %44 = math.log %43 : vector<16x1xf32>
    %45 = vector.broadcast %44 : vector<16x1xf32> to vector<16x128xf32>
    %46 = arith.subf %40, %45 : vector<16x128xf32>
    %c0_16 = arith.constant 0 : index
    %c0_17 = arith.constant 0 : index
    %47 = vector.load %arg5[%c0_16, %c0_17] : memref<16x128xf32, #tpu.memory_space<vmem>>, vector<16x128xf32>
    tpu.vector_store %arg5[%c0_16, %c0_17], %46 {strides = array<i32>} : memref<16x128xf32, #tpu.memory_space<vmem>>, vector<16x128xf32>,
    return
  }
  func.func @transform_0(%arg0: i32) -> (i32, i32) {
    %c0_i32 = arith.constant 0 : i32
    %c0_i32_0 = arith.constant 0 : i32
    %c0_i32_1 = arith.constant 0 : i32
    return %c0_i32, %c0_i32_0 : i32, i32
  }
  func.func @transform_1(%arg0: i32) -> (i32, i32) {
    %c0_i32 = arith.constant 0 : i32
    %c0_i32_0 = arith.constant 0 : i32
    return %arg0, %c0_i32 : i32, i32
  }
  func.func @transform_2(%arg0: i32) -> (i32, i32) {
    %c0_i32 = arith.constant 0 : i32
    %c0_i32_0 = arith.constant 0 : i32
    %c0_i32_1 = arith.constant 0 : i32
    return %c0_i32, %c0_i32_0 : i32, i32
  }
  func.func @transform_3(%arg0: i32) -> (i32, i32) {
    %c0_i32 = arith.constant 0 : i32
    %c0_i32_0 = arith.constant 0 : i32
    return %arg0, %c0_i32 : i32, i32
  }
  func.func @transform_4(%arg0: i32) -> (i32, i32) {
    %c0_i32 = arith.constant 0 : i32
    %c0_i32_0 = arith.constant 0 : i32
    return %arg0, %c0_i32 : i32, i32
  }
}

</mosaic_0001>

<llo_original>
// kernel: gat_forward.3
$region0: #{gat_forward.3}
  #allocation0 [shape = 'u32[]', space=smem, size = 0x4, offset = 0x4, fixed_abs, tag = 'smem constant byte address 0x4 - core index']
  #allocation1 [shape = 'u32[144,128]{1,0:T(1,128)}', space=vmem, size = 0x12000, scoped, tag = 'internal scratch']
  %s0 = inlined_call_operand.vmem [shape: bf16[16,128], index: 0, kind: input, shape index: {}]
  %s1 = inlined_call_operand.vmem [shape: f32[16,1], index: 1, kind: input, shape index: {}]
  %s2 = inlined_call_operand.vmem [shape: f32[1,16], index: 2, kind: input, shape index: {}]
  %s3 = inlined_call_operand.vmem [shape: bf16[16,16], index: 3, kind: input, shape index: {}]
  %s4 = inlined_call_operand.vmem [shape: f32[16,128], index: 4, kind: output, shape index: {}]
  %s5 = sld [smem:[#allocation0]]
  $region26: #{gat_forward.3} parent=0
    _
  %s7 = ssub.s32 1, %s5
  %s8 = scalar_select 0, %s7, %s5
  // Predicated region
  $region2: #{gat_forward.3} parent=0 // pred_check
    _
  $region3: #{gat_forward.3} parent=0 // pred_check_branch
    %10 = sbr.rel (0) target = $region5
  $region4: #{gat_forward.3} parent=0 // pred_region
    _
  $region5: #{gat_forward.3} parent=0 // pred_fallthru
    _
  // Predicated region
  $region6: #{gat_forward.3} parent=0 // pred_check
    _
  $region7: #{gat_forward.3} parent=0 // pred_check_branch
    %12 = sbr.rel (0) target = $region9
  $region8: #{gat_forward.3} parent=0 // pred_region
    _
  $region9: #{gat_forward.3} parent=0 // pred_fallthru
    _
  // Predicated region
  $region10: #{gat_forward.3} parent=0 // pred_check
    _
  $region11: #{gat_forward.3} parent=0 // pred_check_branch
    %14 = sbr.rel (0) target = $region13
  $region12: #{gat_forward.3} parent=0 // pred_region
    _
  $region13: #{gat_forward.3} parent=0 // pred_fallthru
    _
  // Predicated region
  $region14: #{gat_forward.3} parent=0 // pred_check
    _
  $region15: #{gat_forward.3} parent=0 // pred_check_branch
    %16 = sbr.rel (0) target = $region17
  $region16: #{gat_forward.3} parent=0 // pred_region
    _
  $region17: #{gat_forward.3} parent=0 // pred_fallthru
    _
  %v18 = vld [vmem:[%s1] sm:$0xff]
  %v19 = vld [vmem:[%s1 + $0x8] sm:$0xff]
  %v20 = vld [vmem:[%s2] sm:$0x1]
  %22 = vset.pattern.permute.xlu0 0
  %23 = vperm.xlu0 %22, %v18
  %v24 = vpop.permute.xlu0 %23
  %27 = vset.pattern.permute.xlu0 0
  %28 = vperm.xlu0 %27, %v19
  %v29 = vpop.permute.xlu0 %28
  %v32 = vlaneseq
  %v33 = vshrl.u32 %v32, 7
  %v34 = vsub.s32 0, %v33
  %v35 = vrot.slane %v20, %v34
  %v37 = vadd.f32 %v24, %v35
  %v38 = vadd.f32 %v29, %v35
  %vm39 = vcmp.gt.f32.partialorder %v37, 0.0
  %vm40 = vcmp.gt.f32.partialorder %v38, 0.0
  %v41 = vmul.f32 %v37, 0.2
  %v42 = vmul.f32 %v38, 0.2
  %v43 = vsel %vm39, %v37, %v41
  %v44 = vsel %vm40, %v38, %v42
  %vm45 = vcmask 130048
  %v46 = vsel %vm45, %v43, -inf
  %47 = vmax.xlane.f32.xlu0 %v46
  %v48 = vpop.xlane.xlu0 %47
  %v49 = vsel %vm45, %v44, -inf
  %50 = vmax.xlane.f32.xlu0 %v49
  %v51 = vpop.xlane.xlu0 %50
  %v52 = vsub.f32 %v43, %v48
  %v53 = vsub.f32 %v44, %v51
  %v54 = vmul.f32 %v52, 1.442695
  %v55 = vpow.pop %v54
  %v56 = vmul.f32 %v53, 1.442695
  %v57 = vpow.pop %v56
  %v58 = vld [vmem:[%s3] sm:$0xf]
  %v59 = vld [vmem:[%s3 + $0x4] sm:$0xf]
  %v60 = vunpack.c.l.bf16 %v58
  %v61 = vunpack.c.l.bf16 %v59
  %v62 = vmul.f32 %v55, %v60
  %v63 = vmul.f32 %v57, %v61
  %v64 = vsel %vm45, %v62, 0.0
  %65 = vadd.xlane.f32.xlu0 %v64
  %v66 = vpop.xlane.xlu0 %65
  %v67 = vsel %vm45, %v63, 0.0
  %68 = vadd.xlane.f32.xlu0 %v67
  %v69 = vpop.xlane.xlu0 %68
  %v70 = vrcp.pop %v66
  %v71 = vrcp.pop %v69
  %v72 = vmul.f32 %v62, %v70
  %v73 = vmul.f32 %v63, %v71
  %v74 = vpack.c.bf16 %v73, %v72
  %v75 = vld [vmem:[%s0] sm:$0xf]
  %v76 = vld [vmem:[%s0 + $0x4] sm:$0xf]
  %v79 = vunpack.c.l.b16 %v75
  %v80 = vunpack.c.l.b16 %v76
  %v81 = vpack.c.b16 %v80, %v79
  %v84 = vsel %vm45, %v74, 0
  %86 = vmatprep.subr.bf16.mxu0 0
  %87 = vmatpush1.bf16.msra.mxu0 0
  %88 = vmatprep.subr.bf16.mxu0 0
  %89 = vmatpush1.bf16.msra.mxu0 0
  %90 = vmatprep.subr.bf16.mxu0 0
  %91 = vmatpush1.bf16.msra.mxu0 0
  %92 = vmatprep.subr.bf16.mxu0 0
  %93 = vmatpush1.bf16.msra.mxu0 0
  %94 = vmatprep.subr.bf16.mxu0 0
  %95 = vmatpush1.bf16.msra.mxu0 0
  %96 = vmatprep.subr.bf16.mxu0 0
  %97 = vmatpush1.bf16.msra.mxu0 0
  %98 = vmatprep.subr.bf16.mxu0 0
  %99 = vmatpush1.bf16.msra.mxu0 0
  %100 = vmatprep.subr.bf16.mxu0 0
  %101 = vmatpush1.bf16.msra.mxu0 %v81
  %102 = vmatprep.subr.bf16.mxu0 0
  %103 = vmatpush2.bf16.msra.mxu0 0
  %104 = vmatprep.subr.bf16.mxu0 0
  %105 = vmatpush2.bf16.msra.mxu0 0
  %106 = vmatprep.subr.bf16.mxu0 0
  %107 = vmatpush2.bf16.msra.mxu0 0
  %108 = vmatprep.subr.bf16.mxu0 0
  %109 = vmatpush2.bf16.msra.mxu0 0
  %110 = vmatprep.subr.bf16.mxu0 0
  %111 = vmatpush2.bf16.msra.mxu0 0
  %112 = vmatprep.subr.bf16.mxu0 0
  %113 = vmatpush2.bf16.msra.mxu0 0
  %114 = vmatprep.subr.bf16.mxu0 0
  %115 = vmatpush2.bf16.msra.mxu0 0
  %116 = vmatprep.subr.bf16.mxu0 0
  %117 = vmatpush2.bf16.msra.mxu0 0
  %118 = vmatprep.mubr.bf16.mxu0 0
  %119 = vmatmul.mubr.bf16.gmra.mxu0 %v84
  %v120 = vpop.f32.mrf.mxu0
  %v121 = vadd.f32 0.0, %v120
  %v122 = vpop.f32.mrf.mxu0
  %v123 = vpop.f32.mrf.mxu0
  %v124 = vadd.f32 0.0, %v123
  %v125 = vpop.f32.mrf.mxu0
  %126 = vdwg.mxu0
  %vm127 = vcmp.gt.f32.partialorder %v121, 0.0
  %vm128 = vcmp.gt.f32.partialorder %v124, 0.0
  %v129 = vmul.f32 %v121, 1.442695
  %v130 = vpow.pop %v129
  %v131 = vmul.f32 %v124, 1.442695
  %v132 = vpow.pop %v131
  %v133 = vsub.f32 %v130, 1.0
  %v134 = vsub.f32 %v132, 1.0
  %v135 = vsel %vm127, %v121, %v133
  %v136 = vsel %vm128, %v124, %v134
  %v137 = vlaneseq
  %v138 = vand.u32 %v137, 127
  %vm139 = vcmp.lt.s32.totalorder %v138, 4
  %v140 = vsel %vm139, %v135, -9e+15
  %v141 = vsel %vm139, %v136, -9e+15
  %142 = vmax.xlane.f32.xlu0 %v140
  %v143 = vpop.xlane.xlu0 %142
  %144 = vmax.xlane.f32.xlu0 %v141
  %v145 = vpop.xlane.xlu0 %144
  %v146 = vsub.f32 %v140, %v143
  %v147 = vsub.f32 %v141, %v145
  %v148 = vmul.f32 %v146, 1.442695
  %v149 = vpow.pop %v148
  %v150 = vmul.f32 %v147, 1.442695
  %v151 = vpow.pop %v150
  %152 = vadd.xlane.f32.xlu0 %v149
  %v153 = vpop.xlane.xlu0 %152
  %154 = vadd.xlane.f32.xlu0 %v151
  %v155 = vpop.xlane.xlu0 %154
  %v156 = vlog2.pop %v153
  %v157 = vmul.f32 %v156, 0.6931472
  %v158 = vlog2.pop %v155
  %v159 = vmul.f32 %v158, 0.6931472
  %v160 = vsub.f32 %v146, %v157
  %v161 = vsub.f32 %v147, %v159
  %162 = vst [vmem:[%s4] sm:$0xff] %v160
  %163 = vst [vmem:[%s4 + $0x8] sm:$0xff] %v161
  // Predicated region
  $region18: #{gat_forward.3} parent=0 // pred_check
    _
  $region19: #{gat_forward.3} parent=0 // pred_check_branch
    %165 = sbr.rel (0) target = $region21
  $region20: #{gat_forward.3} parent=0 // pred_region
    _
  $region21: #{gat_forward.3} parent=0 // pred_fallthru
    _
  // Predicated region
  $region22: #{gat_forward.3} parent=0 // pred_check
    _
  $region23: #{gat_forward.3} parent=0 // pred_check_branch
    %167 = sbr.rel (0) target = $region25
  $region24: #{gat_forward.3} parent=0 // pred_region
    _
  $region25: #{gat_forward.3} parent=0 // pred_fallthru
    _

// kernel: gat_forward.2
$region0: #{gat_forward.2}
  #allocation0 [shape = 'u32[]', space=smem, size = 0x4, offset = 0x4, fixed_abs, tag = 'smem constant byte address 0x4 - core index']
  #allocation1 [shape = 'u32[144,128]{1,0:T(1,128)}', space=vmem, size = 0x12000, scoped, tag = 'internal scratch']
  %s0 = inlined_call_operand.vmem [shape: bf16[16,32], index: 0, kind: input, shape index: {}]
  %s1 = inlined_call_operand.vmem [shape: f32[16,4], index: 1, kind: input, shape index: {}]
  %s2 = inlined_call_operand.vmem [shape: f32[4,16], index: 2, kind: input, shape index: {}]
  %s3 = inlined_call_operand.vmem [shape: f32[1,32], index: 3, kind: input, shape index: {}]
  %s4 = inlined_call_operand.vmem [shape: bf16[16,16], index: 4, kind: input, shape index: {}]
  %s5 = inlined_call_operand.vmem [shape: bf16[16,128], index: 5, kind: output, shape index: {}]
  %s6 = sld [smem:[#allocation0]]
  $region30: #{gat_forward.2} parent=0
    _
  %s8 = ssub.s32 1, %s6
  %s9 = scalar_select 0, %s8, %s6
  // Predicated region
  $region2: #{gat_forward.2} parent=0 // pred_check
    _
  $region3: #{gat_forward.2} parent=0 // pred_check_branch
    %11 = sbr.rel (0) target = $region5
  $region4: #{gat_forward.2} parent=0 // pred_region
    _
  $region5: #{gat_forward.2} parent=0 // pred_fallthru
    _
  // Predicated region
  $region6: #{gat_forward.2} parent=0 // pred_check
    _
  $region7: #{gat_forward.2} parent=0 // pred_check_branch
    %13 = sbr.rel (0) target = $region9
  $region8: #{gat_forward.2} parent=0 // pred_region
    _
  $region9: #{gat_forward.2} parent=0 // pred_fallthru
    _
  // Predicated region
  $region10: #{gat_forward.2} parent=0 // pred_check
    _
  $region11: #{gat_forward.2} parent=0 // pred_check_branch
    %15 = sbr.rel (0) target = $region13
  $region12: #{gat_forward.2} parent=0 // pred_region
    _
  $region13: #{gat_forward.2} parent=0 // pred_fallthru
    _
  // Predicated region
  $region14: #{gat_forward.2} parent=0 // pred_check
    _
  $region15: #{gat_forward.2} parent=0 // pred_check_branch
    %17 = sbr.rel (0) target = $region17
  $region16: #{gat_forward.2} parent=0 // pred_region
    _
  $region17: #{gat_forward.2} parent=0 // pred_fallthru
    _
  // Predicated region
  $region18: #{gat_forward.2} parent=0 // pred_check
    _
  $region19: #{gat_forward.2} parent=0 // pred_check_branch
    %19 = sbr.rel (0) target = $region21
  $region20: #{gat_forward.2} parent=0 // pred_region
    _
  $region21: #{gat_forward.2} parent=0 // pred_fallthru
    _
  %v21 = vld [vmem:[%s4] sm:$0xf]
  %v22 = vld [vmem:[%s4 + $0x4] sm:$0xf]
  %v23 = vunpack.c.l.bf16 %v21
  %v24 = vunpack.c.l.bf16 %v22
  %v25 = vld [vmem:[%s1] sm:$0xff]
  %v26 = vld [vmem:[%s1 + $0x8] sm:$0xff]
  %v27 = vld [vmem:[%s2] sm:$0x1]
  %29 = vset.pattern.permute.xlu0 0
  %30 = vperm.xlu0 %29, %v25
  %v31 = vpop.permute.xlu0 %30
  %34 = vset.pattern.permute.xlu0 0
  %35 = vperm.xlu0 %34, %v26
  %v36 = vpop.permute.xlu0 %35
  %v38 = vlaneseq
  %v39 = vshrl.u32 %v38, 7
  %v40 = vsub.s32 0, %v39
  %v41 = vrot.slane %v27, %v40
  %v42 = vadd.f32 %v31, %v41
  %v43 = vadd.f32 %v36, %v41
  %vm44 = vcmp.gt.f32.partialorder %v42, 0.0
  %vm45 = vcmp.gt.f32.partialorder %v43, 0.0
  %v46 = vmul.f32 %v42, 0.2
  %v47 = vmul.f32 %v43, 0.2
  %v48 = vsel %vm44, %v42, %v46
  %v49 = vsel %vm45, %v43, %v47
  %vm50 = vcmask 130048
  %v51 = vsel %vm50, %v48, -inf
  %52 = vmax.xlane.f32.xlu0 %v51
  %v53 = vpop.xlane.xlu0 %52
  %v54 = vsel %vm50, %v49, -inf
  %55 = vmax.xlane.f32.xlu0 %v54
  %v56 = vpop.xlane.xlu0 %55
  %v57 = vsub.f32 %v48, %v53
  %v58 = vsub.f32 %v49, %v56
  %v59 = vmul.f32 %v57, 1.442695
  %v60 = vpow.pop %v59
  %v61 = vmul.f32 %v58, 1.442695
  %v62 = vpow.pop %v61
  %v63 = vmul.f32 %v60, %v23
  %v64 = vmul.f32 %v62, %v24
  %v65 = vsel %vm50, %v63, 0.0
  %66 = vadd.xlane.f32.xlu0 %v65
  %v67 = vpop.xlane.xlu0 %66
  %v68 = vsel %vm50, %v64, 0.0
  %69 = vadd.xlane.f32.xlu0 %v68
  %v70 = vpop.xlane.xlu0 %69
  %v71 = vrcp.pop %v67
  %v72 = vrcp.pop %v70
  %v73 = vmul.f32 %v63, %v71
  %v74 = vmul.f32 %v64, %v72
  %v75 = vpack.c.bf16 %v74, %v73
  %v76 = vld [vmem:[%s0] sm:$0xf]
  %v77 = vld [vmem:[%s0 + $0x4] sm:$0xf]
  %v78 = vld [vmem:[%s3] sm:$0x1]
  %v80 = vlaneseq
  %v81 = vshrl.u32 %v80, 7
  %v82 = vsub.s32 0, %v81
  %v83 = vrot.slane %v78, %v82
  %v87 = vunpack.c.l.b16 %v76
  %v88 = vunpack.c.l.b16 %v77
  %v89 = vpack.c.b16 %v88, %v87
  %v92 = vsel %vm50, %v75, 0
  %94 = vmatprep.subr.bf16.mxu0 0
  %95 = vmatpush1.bf16.msra.mxu0 0
  %96 = vmatprep.subr.bf16.mxu0 0
  %97 = vmatpush1.bf16.msra.mxu0 0
  %98 = vmatprep.subr.bf16.mxu0 0
  %99 = vmatpush1.bf16.msra.mxu0 0
  %100 = vmatprep.subr.bf16.mxu0 0
  %101 = vmatpush1.bf16.msra.mxu0 0
  %102 = vmatprep.subr.bf16.mxu0 0
  %103 = vmatpush1.bf16.msra.mxu0 0
  %104 = vmatprep.subr.bf16.mxu0 0
  %105 = vmatpush1.bf16.msra.mxu0 0
  %106 = vmatprep.subr.bf16.mxu0 0
  %107 = vmatpush1.bf16.msra.mxu0 0
  %108 = vmatprep.subr.bf16.mxu0 0
  %109 = vmatpush1.bf16.msra.mxu0 %v89
  %110 = vmatprep.subr.bf16.mxu0 0
  %111 = vmatpush2.bf16.msra.mxu0 0
  %112 = vmatprep.subr.bf16.mxu0 0
  %113 = vmatpush2.bf16.msra.mxu0 0
  %114 = vmatprep.subr.bf16.mxu0 0
  %115 = vmatpush2.bf16.msra.mxu0 0
  %116 = vmatprep.subr.bf16.mxu0 0
  %117 = vmatpush2.bf16.msra.mxu0 0
  %118 = vmatprep.subr.bf16.mxu0 0
  %119 = vmatpush2.bf16.msra.mxu0 0
  %120 = vmatprep.subr.bf16.mxu0 0
  %121 = vmatpush2.bf16.msra.mxu0 0
  %122 = vmatprep.subr.bf16.mxu0 0
  %123 = vmatpush2.bf16.msra.mxu0 0
  %124 = vmatprep.subr.bf16.mxu0 0
  %125 = vmatpush2.bf16.msra.mxu0 0
  %126 = vmatprep.mubr.bf16.mxu0 0
  %127 = vmatmul.mubr.bf16.gmra.mxu0 %v92
  %v128 = vpop.f32.mrf.mxu0
  %v129 = vadd.f32 %v83, %v128
  %v130 = vpop.f32.mrf.mxu0
  %v131 = vpop.f32.mrf.mxu0
  %v132 = vadd.f32 %v83, %v131
  %v133 = vpop.f32.mrf.mxu0
  %134 = vdwg.mxu0
  %vm135 = vcmp.gt.f32.partialorder %v129, 0.0
  %vm136 = vcmp.gt.f32.partialorder %v132, 0.0
  %v137 = vmul.f32 %v129, 1.442695
  %v138 = vpow.pop %v137
  %v139 = vmul.f32 %v132, 1.442695
  %v140 = vpow.pop %v139
  %v141 = vsub.f32 %v138, 1.0
  %v142 = vsub.f32 %v140, 1.0
  %v143 = vsel %vm135, %v129, %v141
  %v144 = vsel %vm136, %v132, %v142
  %v145 = vpack.c.bf16 %v144, %v143
  %v147 = vunpack.c.l.b16 %v145
  %v148 = vunpack.c.h.b16 %v145
  %v149 = vpack.c.b16 %v147, %v147
  %v150 = vpack.c.b16 %v148, %v148
  %vm153 = vcmask 60416
  %154 = vst.msk [vmem:[%s5] sm:$0xf] %vm153, %v149
  %155 = vst.msk [vmem:[%s5 + $0x4] sm:$0xf] %vm153, %v150
  %v156 = vld [vmem:[%s1] sm:$0xff]
  %v157 = vld [vmem:[%s1 + $0x8] sm:$0xff]
  %v158 = vld [vmem:[%s2 + $0x1] sm:$0x1]
  %160 = vset.pattern.permute.xlu0 1
  %161 = vperm.xlu0 %160, %v156
  %v162 = vpop.permute.xlu0 %161
  %165 = vset.pattern.permute.xlu0 1
  %166 = vperm.xlu0 %165, %v157
  %v167 = vpop.permute.xlu0 %166
  %v169 = vlaneseq
  %v170 = vshrl.u32 %v169, 7
  %v171 = vsub.s32 0, %v170
  %v172 = vrot.slane %v158, %v171
  %v173 = vadd.f32 %v162, %v172
  %v174 = vadd.f32 %v167, %v172
  %vm175 = vcmp.gt.f32.partialorder %v173, 0.0
  %vm176 = vcmp.gt.f32.partialorder %v174, 0.0
  %v177 = vmul.f32 %v173, 0.2
  %v178 = vmul.f32 %v174, 0.2
  %v179 = vsel %vm175, %v173, %v177
  %v180 = vsel %vm176, %v174, %v178
  %v181 = vsel %vm50, %v179, -inf
  %182 = vmax.xlane.f32.xlu0 %v181
  %v183 = vpop.xlane.xlu0 %182
  %v184 = vsel %vm50, %v180, -inf
  %185 = vmax.xlane.f32.xlu0 %v184
  %v186 = vpop.xlane.xlu0 %185
  %v187 = vsub.f32 %v179, %v183
  %v188 = vsub.f32 %v180, %v186
  %v189 = vmul.f32 %v187, 1.442695
  %v190 = vpow.pop %v189
  %v191 = vmul.f32 %v188, 1.442695
  %v192 = vpow.pop %v191
  %v193 = vmul.f32 %v190, %v23
  %v194 = vmul.f32 %v192, %v24
  %v195 = vsel %vm50, %v193, 0.0
  %196 = vadd.xlane.f32.xlu0 %v195
  %v197 = vpop.xlane.xlu0 %196
  %v198 = vsel %vm50, %v194, 0.0
  %199 = vadd.xlane.f32.xlu0 %v198
  %v200 = vpop.xlane.xlu0 %199
  %v201 = vrcp.pop %v197
  %v202 = vrcp.pop %v200
  %v203 = vmul.f32 %v193, %v201
  %v204 = vmul.f32 %v194, %v202
  %v205 = vpack.c.bf16 %v204, %v203
  %v206 = vld [vmem:[%s0] sm:$0xf]
  %v207 = vld [vmem:[%s0 + $0x4] sm:$0xf]
  %v208 = vld [vmem:[%s3] sm:$0x1]
  %v210 = vlaneseq
  %v211 = vshrl.u32 %v210, 7
  %v212 = vsub.s32 0, %v211
  %v213 = vrot.slane %v208, %v212
  %v216 = vunpack.c.l.b16 %v206
  %v217 = vunpack.c.l.b16 %v207
  %v218 = vpack.c.b16 %v217, %v216
  %219 = vrot.lane.b32.xlu0 %v218, 120
  %v220 = vpop.permute.xlu0 %219
  %222 = vrot.lane.b32.xlu0 %v213, 120
  %v223 = vpop.permute.xlu0 %222
  %v226 = vsel %vm50, %v205, 0
  %228 = vmatprep.subr.bf16.mxu0 0
  %229 = vmatpush1.bf16.msra.mxu0 0
  %230 = vmatprep.subr.bf16.mxu0 0
  %231 = vmatpush1.bf16.msra.mxu0 0
  %232 = vmatprep.subr.bf16.mxu0 0
  %233 = vmatpush1.bf16.msra.mxu0 0
  %234 = vmatprep.subr.bf16.mxu0 0
  %235 = vmatpush1.bf16.msra.mxu0 0
  %236 = vmatprep.subr.bf16.mxu0 0
  %237 = vmatpush1.bf16.msra.mxu0 0
  %238 = vmatprep.subr.bf16.mxu0 0
  %239 = vmatpush1.bf16.msra.mxu0 0
  %240 = vmatprep.subr.bf16.mxu0 0
  %241 = vmatpush1.bf16.msra.mxu0 0
  %242 = vmatprep.subr.bf16.mxu0 0
  %243 = vmatpush1.bf16.msra.mxu0 %v220
  %244 = vmatprep.subr.bf16.mxu0 0
  %245 = vmatpush2.bf16.msra.mxu0 0
  %246 = vmatprep.subr.bf16.mxu0 0
  %247 = vmatpush2.bf16.msra.mxu0 0
  %248 = vmatprep.subr.bf16.mxu0 0
  %249 = vmatpush2.bf16.msra.mxu0 0
  %250 = vmatprep.subr.bf16.mxu0 0
  %251 = vmatpush2.bf16.msra.mxu0 0
  %252 = vmatprep.subr.bf16.mxu0 0
  %253 = vmatpush2.bf16.msra.mxu0 0
  %254 = vmatprep.subr.bf16.mxu0 0
  %255 = vmatpush2.bf16.msra.mxu0 0
  %256 = vmatprep.subr.bf16.mxu0 0
  %257 = vmatpush2.bf16.msra.mxu0 0
  %258 = vmatprep.subr.bf16.mxu0 0
  %259 = vmatpush2.bf16.msra.mxu0 0
  %260 = vmatprep.mubr.bf16.mxu0 0
  %261 = vmatmul.mubr.bf16.gmra.mxu0 %v226
  %v262 = vpop.f32.mrf.mxu0
  %v263 = vadd.f32 %v223, %v262
  %v264 = vpop.f32.mrf.mxu0
  %v265 = vpop.f32.mrf.mxu0
  %v266 = vadd.f32 %v223, %v265
  %v267 = vpop.f32.mrf.mxu0
  %268 = vdwg.mxu0
  %vm269 = vcmp.gt.f32.partialorder %v263, 0.0
  %vm270 = vcmp.gt.f32.partialorder %v266, 0.0
  %v271 = vmul.f32 %v263, 1.442695
  %v272 = vpow.pop %v271
  %v273 = vmul.f32 %v266, 1.442695
  %v274 = vpow.pop %v273
  %v275 = vsub.f32 %v272, 1.0
  %v276 = vsub.f32 %v274, 1.0
  %v277 = vsel %vm269, %v263, %v275
  %v278 = vsel %vm270, %v266, %v276
  %v279 = vpack.c.bf16 %v278, %v277
  %v281 = vunpack.c.l.b16 %v279
  %v282 = vunpack.c.h.b16 %v279
  %v283 = vpack.c.b16 %v281, %v281
  %v284 = vpack.c.b16 %v282, %v282
  %285 = vrot.lane.b32.xlu0 %v283, 8
  %v286 = vpop.permute.xlu0 %285
  %287 = vrot.lane.b32.xlu0 %v284, 8
  %v288 = vpop.permute.xlu0 %287
  %vm291 = vcmask 126016
  %292 = vst.msk [vmem:[%s5] sm:$0xf] %vm291, %v286
  %293 = vst.msk [vmem:[%s5 + $0x4] sm:$0xf] %vm291, %v288
  %v294 = vld [vmem:[%s1] sm:$0xff]
  %v295 = vld [vmem:[%s1 + $0x8] sm:$0xff]
  %v296 = vld [vmem:[%s2 + $0x2] sm:$0x1]
  %298 = vset.pattern.permute.xlu0 2
  %299 = vperm.xlu0 %298, %v294
  %v300 = vpop.permute.xlu0 %299
  %303 = vset.pattern.permute.xlu0 2
  %304 = vperm.xlu0 %303, %v295
  %v305 = vpop.permute.xlu0 %304
  %v307 = vlaneseq
  %v308 = vshrl.u32 %v307, 7
  %v309 = vsub.s32 0, %v308
  %v310 = vrot.slane %v296, %v309
  %v311 = vadd.f32 %v300, %v310
  %v312 = vadd.f32 %v305, %v310
  %vm313 = vcmp.gt.f32.partialorder %v311, 0.0
  %vm314 = vcmp.gt.f32.partialorder %v312, 0.0
  %v315 = vmul.f32 %v311, 0.2
  %v316 = vmul.f32 %v312, 0.2
  %v317 = vsel %vm313, %v311, %v315
  %v318 = vsel %vm314, %v312, %v316
  %v319 = vsel %vm50, %v317, -inf
  %320 = vmax.xlane.f32.xlu0 %v319
  %v321 = vpop.xlane.xlu0 %320
  %v322 = vsel %vm50, %v318, -inf
  %323 = vmax.xlane.f32.xlu0 %v322
  %v324 = vpop.xlane.xlu0 %323
  %v325 = vsub.f32 %v317, %v321
  %v326 = vsub.f32 %v318, %v324
  %v327 = vmul.f32 %v325, 1.442695
  %v328 = vpow.pop %v327
  %v329 = vmul.f32 %v326, 1.442695
  %v330 = vpow.pop %v329
  %v331 = vmul.f32 %v328, %v23
  %v332 = vmul.f32 %v330, %v24
  %v333 = vsel %vm50, %v331, 0.0
  %334 = vadd.xlane.f32.xlu0 %v333
  %v335 = vpop.xlane.xlu0 %334
  %v336 = vsel %vm50, %v332, 0.0
  %337 = vadd.xlane.f32.xlu0 %v336
  %v338 = vpop.xlane.xlu0 %337
  %v339 = vrcp.pop %v335
  %v340 = vrcp.pop %v338
  %v341 = vmul.f32 %v331, %v339
  %v342 = vmul.f32 %v332, %v340
  %v343 = vpack.c.bf16 %v342, %v341
  %v344 = vld [vmem:[%s0] sm:$0xf]
  %v345 = vld [vmem:[%s0 + $0x4] sm:$0xf]
  %v346 = vld [vmem:[%s3] sm:$0x1]
  %v348 = vlaneseq
  %v349 = vshrl.u32 %v348, 7
  %v350 = vsub.s32 0, %v349
  %v351 = vrot.slane %v346, %v350
  %v354 = vunpack.c.l.b16 %v344
  %v355 = vunpack.c.l.b16 %v345
  %v356 = vpack.c.b16 %v355, %v354
  %357 = vrot.lane.b32.xlu0 %v356, 112
  %v358 = vpop.permute.xlu0 %357
  %360 = vrot.lane.b32.xlu0 %v351, 112
  %v361 = vpop.permute.xlu0 %360
  %v364 = vsel %vm50, %v343, 0
  %366 = vmatprep.subr.bf16.mxu0 0
  %367 = vmatpush1.bf16.msra.mxu0 0
  %368 = vmatprep.subr.bf16.mxu0 0
  %369 = vmatpush1.bf16.msra.mxu0 0
  %370 = vmatprep.subr.bf16.mxu0 0
  %371 = vmatpush1.bf16.msra.mxu0 0
  %372 = vmatprep.subr.bf16.mxu0 0
  %373 = vmatpush1.bf16.msra.mxu0 0
  %374 = vmatprep.subr.bf16.mxu0 0
  %375 = vmatpush1.bf16.msra.mxu0 0
  %376 = vmatprep.subr.bf16.mxu0 0
  %377 = vmatpush1.bf16.msra.mxu0 0
  %378 = vmatprep.subr.bf16.mxu0 0
  %379 = vmatpush1.bf16.msra.mxu0 0
  %380 = vmatprep.subr.bf16.mxu0 0
  %381 = vmatpush1.bf16.msra.mxu0 %v358
  %382 = vmatprep.subr.bf16.mxu0 0
  %383 = vmatpush2.bf16.msra.mxu0 0
  %384 = vmatprep.subr.bf16.mxu0 0
  %385 = vmatpush2.bf16.msra.mxu0 0
  %386 = vmatprep.subr.bf16.mxu0 0
  %387 = vmatpush2.bf16.msra.mxu0 0
  %388 = vmatprep.subr.bf16.mxu0 0
  %389 = vmatpush2.bf16.msra.mxu0 0
  %390 = vmatprep.subr.bf16.mxu0 0
  %391 = vmatpush2.bf16.msra.mxu0 0
  %392 = vmatprep.subr.bf16.mxu0 0
  %393 = vmatpush2.bf16.msra.mxu0 0
  %394 = vmatprep.subr.bf16.mxu0 0
  %395 = vmatpush2.bf16.msra.mxu0 0
  %396 = vmatprep.subr.bf16.mxu0 0
  %397 = vmatpush2.bf16.msra.mxu0 0
  %398 = vmatprep.mubr.bf16.mxu0 0
  %399 = vmatmul.mubr.bf16.gmra.mxu0 %v364
  %v400 = vpop.f32.mrf.mxu0
  %v401 = vadd.f32 %v361, %v400
  %v402 = vpop.f32.mrf.mxu0
  %v403 = vpop.f32.mrf.mxu0
  %v404 = vadd.f32 %v361, %v403
  %v405 = vpop.f32.mrf.mxu0
  %406 = vdwg.mxu0
  %vm407 = vcmp.gt.f32.partialorder %v401, 0.0
  %vm408 = vcmp.gt.f32.partialorder %v404, 0.0
  %v409 = vmul.f32 %v401, 1.442695
  %v410 = vpow.pop %v409
  %v411 = vmul.f32 %v404, 1.442695
  %v412 = vpow.pop %v411
  %v413 = vsub.f32 %v410, 1.0
  %v414 = vsub.f32 %v412, 1.0
  %v415 = vsel %vm407, %v401, %v413
  %v416 = vsel %vm408, %v404, %v414
  %v417 = vpack.c.bf16 %v416, %v415
  %v419 = vunpack.c.l.b16 %v417
  %v420 = vunpack.c.h.b16 %v417
  %v421 = vpack.c.b16 %v419, %v419
  %v422 = vpack.c.b16 %v420, %v420
  %423 = vrot.lane.b32.xlu0 %v421, 16
  %v424 = vpop.permute.xlu0 %423
  %425 = vrot.lane.b32.xlu0 %v422, 16
  %v426 = vpop.permute.xlu0 %425
  %vm429 = vcmask 191616
  %430 = vst.msk [vmem:[%s5] sm:$0xf] %vm429, %v424
  %431 = vst.msk [vmem:[%s5 + $0x4] sm:$0xf] %vm429, %v426
  %v432 = vld [vmem:[%s1] sm:$0xff]
  %v433 = vld [vmem:[%s1 + $0x8] sm:$0xff]
  %v434 = vld [vmem:[%s2 + $0x3] sm:$0x1]
  %436 = vset.pattern.permute.xlu0 3
  %437 = vperm.xlu0 %436, %v432
  %v438 = vpop.permute.xlu0 %437
  %441 = vset.pattern.permute.xlu0 3
  %442 = vperm.xlu0 %441, %v433
  %v443 = vpop.permute.xlu0 %442
  %v445 = vlaneseq
  %v446 = vshrl.u32 %v445, 7
  %v447 = vsub.s32 0, %v446
  %v448 = vrot.slane %v434, %v447
  %v449 = vadd.f32 %v438, %v448
  %v450 = vadd.f32 %v443, %v448
  %vm451 = vcmp.gt.f32.partialorder %v449, 0.0
  %vm452 = vcmp.gt.f32.partialorder %v450, 0.0
  %v453 = vmul.f32 %v449, 0.2
  %v454 = vmul.f32 %v450, 0.2
  %v455 = vsel %vm451, %v449, %v453
  %v456 = vsel %vm452, %v450, %v454
  %v457 = vsel %vm50, %v455, -inf
  %458 = vmax.xlane.f32.xlu0 %v457
  %v459 = vpop.xlane.xlu0 %458
  %v460 = vsel %vm50, %v456, -inf
  %461 = vmax.xlane.f32.xlu0 %v460
  %v462 = vpop.xlane.xlu0 %461
  %v463 = vsub.f32 %v455, %v459
  %v464 = vsub.f32 %v456, %v462
  %v465 = vmul.f32 %v463, 1.442695
  %v466 = vpow.pop %v465
  %v467 = vmul.f32 %v464, 1.442695
  %v468 = vpow.pop %v467
  %v469 = vmul.f32 %v466, %v23
  %v470 = vmul.f32 %v468, %v24
  %v471 = vsel %vm50, %v469, 0.0
  %472 = vadd.xlane.f32.xlu0 %v471
  %v473 = vpop.xlane.xlu0 %472
  %v474 = vsel %vm50, %v470, 0.0
  %475 = vadd.xlane.f32.xlu0 %v474
  %v476 = vpop.xlane.xlu0 %475
  %v477 = vrcp.pop %v473
  %v478 = vrcp.pop %v476
  %v479 = vmul.f32 %v469, %v477
  %v480 = vmul.f32 %v470, %v478
  %v481 = vpack.c.bf16 %v480, %v479
  %v482 = vld [vmem:[%s0] sm:$0xf]
  %v483 = vld [vmem:[%s0 + $0x4] sm:$0xf]
  %v484 = vld [vmem:[%s3] sm:$0x1]
  %v486 = vlaneseq
  %v487 = vshrl.u32 %v486, 7
  %v488 = vsub.s32 0, %v487
  %v489 = vrot.slane %v484, %v488
  %v492 = vunpack.c.l.b16 %v482
  %v493 = vunpack.c.l.b16 %v483
  %v494 = vpack.c.b16 %v493, %v492
  %495 = vrot.lane.b32.xlu0 %v494, 104
  %v496 = vpop.permute.xlu0 %495
  %498 = vrot.lane.b32.xlu0 %v489, 104
  %v499 = vpop.permute.xlu0 %498
  %v502 = vsel %vm50, %v481, 0
  %504 = vmatprep.subr.bf16.mxu0 0
  %505 = vmatpush1.bf16.msra.mxu0 0
  %506 = vmatprep.subr.bf16.mxu0 0
  %507 = vmatpush1.bf16.msra.mxu0 0
  %508 = vmatprep.subr.bf16.mxu0 0
  %509 = vmatpush1.bf16.msra.mxu0 0
  %510 = vmatprep.subr.bf16.mxu0 0
  %511 = vmatpush1.bf16.msra.mxu0 0
  %512 = vmatprep.subr.bf16.mxu0 0
  %513 = vmatpush1.bf16.msra.mxu0 0
  %514 = vmatprep.subr.bf16.mxu0 0
  %515 = vmatpush1.bf16.msra.mxu0 0
  %516 = vmatprep.subr.bf16.mxu0 0
  %517 = vmatpush1.bf16.msra.mxu0 0
  %518 = vmatprep.subr.bf16.mxu0 0
  %519 = vmatpush1.bf16.msra.mxu0 %v496
  %520 = vmatprep.subr.bf16.mxu0 0
  %521 = vmatpush2.bf16.msra.mxu0 0
  %522 = vmatprep.subr.bf16.mxu0 0
  %523 = vmatpush2.bf16.msra.mxu0 0
  %524 = vmatprep.subr.bf16.mxu0 0
  %525 = vmatpush2.bf16.msra.mxu0 0
  %526 = vmatprep.subr.bf16.mxu0 0
  %527 = vmatpush2.bf16.msra.mxu0 0
  %528 = vmatprep.subr.bf16.mxu0 0
  %529 = vmatpush2.bf16.msra.mxu0 0
  %530 = vmatprep.subr.bf16.mxu0 0
  %531 = vmatpush2.bf16.msra.mxu0 0
  %532 = vmatprep.subr.bf16.mxu0 0
  %533 = vmatpush2.bf16.msra.mxu0 0
  %534 = vmatprep.subr.bf16.mxu0 0
  %535 = vmatpush2.bf16.msra.mxu0 0
  %536 = vmatprep.mubr.bf16.mxu0 0
  %537 = vmatmul.mubr.bf16.gmra.mxu0 %v502
  %v538 = vpop.f32.mrf.mxu0
  %v539 = vadd.f32 %v499, %v538
  %v540 = vpop.f32.mrf.mxu0
  %v541 = vpop.f32.mrf.mxu0
  %v542 = vadd.f32 %v499, %v541
  %v543 = vpop.f32.mrf.mxu0
  %544 = vdwg.mxu0
  %vm545 = vcmp.gt.f32.partialorder %v539, 0.0
  %vm546 = vcmp.gt.f32.partialorder %v542, 0.0
  %v547 = vmul.f32 %v539, 1.442695
  %v548 = vpow.pop %v547
  %v549 = vmul.f32 %v542, 1.442695
  %v550 = vpow.pop %v549
  %v551 = vsub.f32 %v548, 1.0
  %v552 = vsub.f32 %v550, 1.0
  %v553 = vsel %vm545, %v539, %v551
  %v554 = vsel %vm546, %v542, %v552
  %v555 = vpack.c.bf16 %v554, %v553
  %v557 = vunpack.c.l.b16 %v555
  %v558 = vunpack.c.h.b16 %v555
  %v559 = vpack.c.b16 %v557, %v557
  %v560 = vpack.c.b16 %v558, %v558
  %561 = vrot.lane.b32.xlu0 %v559, 24
  %v562 = vpop.permute.xlu0 %561
  %563 = vrot.lane.b32.xlu0 %v560, 24
  %v564 = vpop.permute.xlu0 %563
  %vm567 = vcmask 257216
  %568 = vst.msk [vmem:[%s5] sm:$0xf] %vm567, %v562
  %569 = vst.msk [vmem:[%s5 + $0x4] sm:$0xf] %vm567, %v564
  %vm570 = vcmask 1043712
  %571 = vst.msk [vmem:[%s5] sm:$0xf] %vm570, 0
  %572 = vst.msk [vmem:[%s5 + $0x4] sm:$0xf] %vm570, 0
  // Predicated region
  $region22: #{gat_forward.2} parent=0 // pred_check
    _
  $region23: #{gat_forward.2} parent=0 // pred_check_branch
    %574 = sbr.rel (0) target = $region25
  $region24: #{gat_forward.2} parent=0 // pred_region
    _
  $region25: #{gat_forward.2} parent=0 // pred_fallthru
    _
  // Predicated region
  $region26: #{gat_forward.2} parent=0 // pred_check
    _
  $region27: #{gat_forward.2} parent=0 // pred_check_branch
    %576 = sbr.rel (0) target = $region29
  $region28: #{gat_forward.2} parent=0 // pred_region
    _
  $region29: #{gat_forward.2} parent=0 // pred_fallthru
    _

</llo_original>
